<compile_context>
chip_gen: v7x
topology: tpu7x:2x2x1
jax: 0.10.0
libtpu: 0.0.40
codegen_flags: <defaults>
</compile_context>

<pallas_src>
import functools

import jax
import jax.numpy as jnp
from jax.experimental import pallas as pl
from jax.experimental.pallas import tpu as pltpu


def _round_up(x, m):
    return ((x + m - 1) // m) * m


def mla_kernel(x_ref, wqkv_ref, bqkv_ref, mask_ref, sbias_ref, wo_ref, bo_ref, out_ref, *,
               hd_pad, latent_dim):
    x = x_ref[...]                                            # (bb, in_pad) bf16

    # Fused Q/K/V projection: one wide bf16 MXU matmul, f32 accumulate, f32 bias add.
    qkv = jnp.dot(x, wqkv_ref[...], preferred_element_type=jnp.float32)
    qkv = qkv + bqkv_ref[...]                                 # (bb, 3*hd_pad) f32
    q = qkv[:, 0 * hd_pad:1 * hd_pad]                         # 128-lane aligned slices
    k = qkv[:, 1 * hd_pad:2 * hd_pad]
    v = qkv[:, 2 * hd_pad:3 * hd_pad]

    # Per-head score reduction via a precomputed block-diagonal mask (1/sqrt(D) folded in).
    # bf16 x bf16 -> f32 on the MXU; result is the per-head score replicated across that
    # head's D lanes, so everything stays 2-D and lane-dense.
    qk = (q * k).astype(jnp.bfloat16)
    scores = jnp.dot(qk, mask_ref[...], preferred_element_type=jnp.float32)
    scores = scores + sbias_ref[...]                          # padded lanes -> -1e30

    # Softmax over heads carried out in the replicated lane space (all f32; v5e-safe):
    #   max over lanes == max over heads;  sum over lanes == D * sum over heads.
    m = jnp.max(scores, axis=-1, keepdims=True)
    e = jnp.exp(scores - m)
    denom = jnp.sum(e, axis=-1, keepdims=True) * (1.0 / latent_dim)
    w = e * pl.reciprocal(denom, approx=True)                 # EUP slot, ~free

    attended = (w * v).astype(jnp.bfloat16)                   # padded lanes are exactly 0
    out = jnp.dot(attended, wo_ref[...], preferred_element_type=jnp.float32)
    out_ref[...] = out + bo_ref[...]                          # (bb, in_pad) f32, lane-dense


def mla_forward(x, params, *, num_heads, latent_dim, block_b=1024):
    B, input_dim = x.shape
    hd = num_heads * latent_dim
    wq, bq, wk, bk, wv, bv, wo, bo = params

    # --- wrapper-side lane padding (multiples of 128) -------------------------------------
    in_pad = _round_up(input_dim, 128)
    hd_pad = _round_up(hd, 128)
    # TODO(synk): on v6e/v7x at production sizes, pad 3*hd_pad / contraction depth to 256
    # multiples to fill the 2x256x256 MXU; 128-alignment is enough for v5e and these shapes.

    def pad2(a, rows, cols):
        return jnp.pad(a, ((0, rows - a.shape[0]), (0, cols - a.shape[1])))

    # Fused + padded projection weights (bf16 MXU inputs); biases stay f32.
    wqkv = jnp.concatenate(
        [pad2(w, in_pad, hd_pad) for w in (wq, wk, wv)], axis=1).astype(jnp.bfloat16)
    bqkv = jnp.concatenate(
        [pad2(b, 1, hd_pad) for b in (bq, bk, bv)], axis=1).astype(jnp.float32)
    wo_p = pad2(wo, hd_pad, in_pad).astype(jnp.bfloat16)
    bo_p = pad2(bo, 1, in_pad).astype(jnp.float32)

    # Block-diagonal head mask (hoisted out of the kernel), 1/sqrt(D) folded in, bf16.
    lane = jnp.arange(hd_pad)
    same_head = (lane[:, None] // latent_dim) == (lane[None, :] // latent_dim)
    valid = lane < hd
    head_mask = (same_head & valid[:, None] & valid[None, :]).astype(jnp.float32)
    head_mask = (head_mask * (1.0 / (latent_dim ** 0.5))).astype(jnp.bfloat16)

    # Additive score bias: 0 on real lanes, very negative on padding lanes.
    score_bias = jnp.where(valid, 0.0, -1e30).astype(jnp.float32)[None, :]

    # --- batch tiling ----------------------------------------------------------------------
    bb = max(16, _round_up(min(block_b, B), 16))   # 16: bf16 sublane pack (covers f32's 8)
    B_pad = _round_up(B, bb)
    x_p = jnp.pad(x, ((0, B_pad - B), (0, in_pad - input_dim))).astype(jnp.bfloat16)
    n_steps = B_pad // bb

    # Grid-invariant operands: constant index_map -> fetched once, VMEM-resident.
    # (pipeline_mode=pl.Buffered(1) would halve their footprint at production sizes.)
    invariant = lambda shape: pl.BlockSpec(shape, lambda i: (0, 0))

    # Explicit VMEM budget: double-buffered operand footprint + headroom for f32
    # temporaries, capped below v7x's 64 MiB physical VMEM per TensorCore.
    tile_bytes = (bb * in_pad * 2 + bb * in_pad * 4          # x tile (bf16) + out tile (f32)
                  + in_pad * 3 * hd_pad * 2 + 3 * hd_pad * 4  # Wqkv + bias
                  + hd_pad * hd_pad * 2 + hd_pad * 4          # mask + score bias
                  + hd_pad * in_pad * 2 + in_pad * 4)         # Wo + bias
    vmem_limit = min(60 * 1024 * 1024, max(32 * 1024 * 1024, 4 * tile_bytes))

    out_p = pl.pallas_call(
        functools.partial(mla_kernel, hd_pad=hd_pad, latent_dim=latent_dim),
        out_shape=jax.ShapeDtypeStruct((B_pad, in_pad), jnp.float32),
        grid_spec=pltpu.PrefetchScalarGridSpec(
            num_scalar_prefetch=0,
            grid=(n_steps,),
            in_specs=[
                pl.BlockSpec((bb, in_pad), lambda i: (i, 0)),   # x tile (pipelined)
                invariant((in_pad, 3 * hd_pad)),                # fused Wqkv
                invariant((1, 3 * hd_pad)),                     # fused bias
                invariant((hd_pad, hd_pad)),                    # head mask (scale folded in)
                invariant((1, hd_pad)),                         # score padding bias
                invariant((hd_pad, in_pad)),                    # Wo
                invariant((1, in_pad)),                         # bo
            ],
            out_specs=pl.BlockSpec((bb, in_pad), lambda i: (i, 0)),
        ),
        compiler_params=pltpu.CompilerParams(
            dimension_semantics=("parallel",),                  # batch tiles shard across TCs
            vmem_limit_bytes=vmem_limit,
        ),
    )(x_p, wqkv, bqkv, head_mask, score_bias, wo_p, bo_p)

    return out_p[:B, :input_dim]


def init_params(key, input_dim, latent_dim, num_heads):
    hd = latent_dim * num_heads
    ks = jax.random.split(key, 8)
    scale = 0.1
    wq = scale * jax.random.normal(ks[0], (input_dim, hd), jnp.float32)
    bq = scale * jax.random.normal(ks[1], (1, hd), jnp.float32)
    wk = scale * jax.random.normal(ks[2], (input_dim, hd), jnp.float32)
    bk = scale * jax.random.normal(ks[3], (1, hd), jnp.float32)
    wv = scale * jax.random.normal(ks[4], (input_dim, hd), jnp.float32)
    bv = scale * jax.random.normal(ks[5], (1, hd), jnp.float32)
    wo = scale * jax.random.normal(ks[6], (hd, input_dim), jnp.float32)
    bo = scale * jax.random.normal(ks[7], (1, input_dim), jnp.float32)
    return (wq, bq, wk, bk, wv, bv, wo, bo)


def _mla_ref(x, params, *, num_heads, latent_dim, bf16_inputs):
    """Pure-JAX reference.  bf16_inputs=True mirrors the kernel's bf16 MXU inputs."""
    wq, bq, wk, bk, wv, bv, wo, bo = params
    rnd = (lambda a: a.astype(jnp.bfloat16).astype(jnp.float32)) if bf16_inputs else (lambda a: a)
    B = x.shape[0]
    xq = rnd(x)
    q = (xq @ rnd(wq) + bq).reshape(B, num_heads, latent_dim)
    k = (xq @ rnd(wk) + bk).reshape(B, num_heads, latent_dim)
    v = (xq @ rnd(wv) + bv).reshape(B, num_heads, latent_dim)
    scale = 1.0 / (latent_dim ** 0.5)
    if bf16_inputs:
        qk = rnd(q * k)                                    # kernel casts q*k to bf16
        scale = float(jnp.bfloat16(scale))                 # scale folded into bf16 mask
        scores = (qk * scale).sum(-1)
    else:
        scores = jnp.einsum('bhd,bhd->bh', q, k) * scale
    w = jax.nn.softmax(scores, axis=-1)
    att = jnp.einsum('bh,bhd->bhd', w, v).reshape(B, -1)
    att = rnd(att)
    return att @ rnd(wo) + bo


if __name__ == "__main__":
    input_dim, latent_dim, num_heads = 32, 8, 4
    B = 128           # block_b=32 -> 4-step "parallel" grid (>=2 steps/core on megacore)

    key = jax.random.PRNGKey(0)
    kx, kp = jax.random.split(key)
    x = jax.random.normal(kx, (B, input_dim), jnp.float32)
    params = init_params(kp, input_dim, latent_dim, num_heads)

    out = mla_forward(x, params, num_heads=num_heads, latent_dim=latent_dim, block_b=32)
    out = jax.block_until_ready(out)
    assert out.shape == (B, input_dim)

    # Matched-precision reference (same bf16-rounded MXU inputs / folded scale as the kernel).
    ref_bf = _mla_ref(x, params, num_heads=num_heads, latent_dim=latent_dim, bf16_inputs=True)
    assert jnp.allclose(out, ref_bf, atol=1e-2, rtol=1e-2), "mismatch vs bf16-matched reference"

    # Loose sanity check against the full-f32 PyTorch-equivalent math.
    ref_f32 = _mla_ref(x, params, num_heads=num_heads, latent_dim=latent_dim, bf16_inputs=False)
    assert jnp.allclose(out, ref_f32, atol=6e-2, rtol=6e-2), "mismatch vs f32 reference"

    print("KERNEL_OK")
</pallas_src>

<mosaic_0001>
module attributes {stable_mosaic.version = 11 : i64} {
  func.func @mla_kernel(%arg0: i32, %arg1: memref<32x128xbf16, #tpu.memory_space<vmem>>, %arg2: memref<128x384xbf16, #tpu.memory_space<vmem>>, %arg3: memref<1x384xf32, #tpu.memory_space<vmem>>, %arg4: memref<128x128xbf16, #tpu.memory_space<vmem>>, %arg5: memref<1x128xf32, #tpu.memory_space<vmem>>, %arg6: memref<128x128xbf16, #tpu.memory_space<vmem>>, %arg7: memref<1x128xf32, #tpu.memory_space<vmem>>, %arg8: memref<32x128xf32, #tpu.memory_space<vmem>>) attributes {dimension_semantics = [#tpu.dimension_semantics<parallel>], iteration_bounds = array<i64: 4>, scalar_prefetch = 0 : i64, scratch_operands = 0 : i64, tpu.core_type = #tpu.core_type<tc>, window_params = [{transform_indices = @transform_0, window_bounds = array<i64: 32, 128>}, {pipeline_mode = #tpu.pipeline_mode<synchronous>, transform_indices = @transform_1, window_bounds = array<i64: 128, 384>}, {pipeline_mode = #tpu.pipeline_mode<synchronous>, transform_indices = @transform_2, window_bounds = array<i64: 1, 384>}, {pipeline_mode = #tpu.pipeline_mode<synchronous>, transform_indices = @transform_3, window_bounds = array<i64: 128, 128>}, {pipeline_mode = #tpu.pipeline_mode<synchronous>, transform_indices = @transform_4, window_bounds = array<i64: 1, 128>}, {pipeline_mode = #tpu.pipeline_mode<synchronous>, transform_indices = @transform_5, window_bounds = array<i64: 128, 128>}, {pipeline_mode = #tpu.pipeline_mode<synchronous>, transform_indices = @transform_6, window_bounds = array<i64: 1, 128>}, {transform_indices = @transform_7, window_bounds = array<i64: 32, 128>}]} {
    %c0 = arith.constant 0 : index
    %c0_0 = arith.constant 0 : index
    %0 = vector.load %arg1[%c0, %c0_0] : memref<32x128xbf16, #tpu.memory_space<vmem>>, vector<32x128xbf16>
    %c0_1 = arith.constant 0 : index
    %c0_2 = arith.constant 0 : index
    %1 = vector.load %arg2[%c0_1, %c0_2] : memref<128x384xbf16, #tpu.memory_space<vmem>>, vector<128x384xbf16>
    %cst = arith.constant dense<0.000000e+00> : vector<32x384xf32>
    %2 = tpu.matmul %0, %1, %cst {dimension_numbers = #tpu.dot_dimension_numbers<[1], [0], [0], [1], [0, 0, 1, 1], [], []>} : vector<32x128xbf16>, vector<128x384xbf16>, vector<32x384xf32> -> vector<32x384xf32>
    %c0_3 = arith.constant 0 : index
    %c0_4 = arith.constant 0 : index
    %3 = vector.load %arg3[%c0_3, %c0_4] : memref<1x384xf32, #tpu.memory_space<vmem>>, vector<1x384xf32>
    %4 = vector.broadcast %3 : vector<1x384xf32> to vector<32x384xf32>
    %5 = arith.addf %2, %4 : vector<32x384xf32>
    %6 = vector.extract_strided_slice %5 {offsets = [0, 0], sizes = [32, 128], strides = [1, 1]} : vector<32x384xf32> to vector<32x128xf32>
    %7 = vector.extract_strided_slice %5 {offsets = [0, 128], sizes = [32, 128], strides = [1, 1]} : vector<32x384xf32> to vector<32x128xf32>
    %8 = vector.extract_strided_slice %5 {offsets = [0, 256], sizes = [32, 128], strides = [1, 1]} : vector<32x384xf32> to vector<32x128xf32>
    %9 = arith.mulf %6, %7 : vector<32x128xf32>
    %10 = arith.truncf %9 : vector<32x128xf32> to vector<32x128xbf16>
    %c0_5 = arith.constant 0 : index
    %c0_6 = arith.constant 0 : index
    %11 = vector.load %arg4[%c0_5, %c0_6] : memref<128x128xbf16, #tpu.memory_space<vmem>>, vector<128x128xbf16>
    %cst_7 = arith.constant dense<0.000000e+00> : vector<32x128xf32>
    %12 = tpu.matmul %10, %11, %cst_7 {dimension_numbers = #tpu.dot_dimension_numbers<[1], [0], [0], [1], [0, 0, 1, 1], [], []>} : vector<32x128xbf16>, vector<128x128xbf16>, vector<32x128xf32> -> vector<32x128xf32>
    %c0_8 = arith.constant 0 : index
    %c0_9 = arith.constant 0 : index
    %13 = vector.load %arg5[%c0_8, %c0_9] : memref<1x128xf32, #tpu.memory_space<vmem>>, vector<1x128xf32>
    %14 = vector.broadcast %13 : vector<1x128xf32> to vector<32x128xf32>
    %15 = arith.addf %12, %14 : vector<32x128xf32>
    %cst_10 = arith.constant dense<0xFF800000> : vector<32xf32>
    %16 = vector.multi_reduction <maximumf>, %15, %cst_10 [1] : vector<32x128xf32> to vector<32xf32>
    %17 = vector.shape_cast %16 : vector<32xf32> to vector<32x1xf32>
    %18 = vector.broadcast %17 : vector<32x1xf32> to vector<32x128xf32>
    %19 = arith.subf %15, %18 : vector<32x128xf32>
    %20 = math.exp %19 : vector<32x128xf32>
    %cst_11 = arith.constant dense<0.000000e+00> : vector<32xf32>
    %21 = vector.multi_reduction <add>, %20, %cst_11 [1] : vector<32x128xf32> to vector<32xf32>
    %22 = vector.shape_cast %21 : vector<32xf32> to vector<32x1xf32>
    %cst_12 = arith.constant 1.250000e-01 : f32
    %23 = vector.broadcast %cst_12 : f32 to vector<32x1xf32>
    %24 = arith.mulf %22, %23 : vector<32x1xf32>
    %25 = tpu.reciprocal %24 {approx = true} : vector<32x1xf32> -> vector<32x1xf32>
    %26 = vector.broadcast %25 : vector<32x1xf32> to vector<32x128xf32>
    %27 = arith.mulf %20, %26 : vector<32x128xf32>
    %28 = arith.mulf %27, %8 : vector<32x128xf32>
    %29 = arith.truncf %28 : vector<32x128xf32> to vector<32x128xbf16>
    %c0_13 = arith.constant 0 : index
    %c0_14 = arith.constant 0 : index
    %30 = vector.load %arg6[%c0_13, %c0_14] : memref<128x128xbf16, #tpu.memory_space<vmem>>, vector<128x128xbf16>
    %cst_15 = arith.constant dense<0.000000e+00> : vector<32x128xf32>
    %31 = tpu.matmul %29, %30, %cst_15 {dimension_numbers = #tpu.dot_dimension_numbers<[1], [0], [0], [1], [0, 0, 1, 1], [], []>} : vector<32x128xbf16>, vector<128x128xbf16>, vector<32x128xf32> -> vector<32x128xf32>
    %c0_16 = arith.constant 0 : index
    %c0_17 = arith.constant 0 : index
    %32 = vector.load %arg7[%c0_16, %c0_17] : memref<1x128xf32, #tpu.memory_space<vmem>>, vector<1x128xf32>
    %33 = vector.broadcast %32 : vector<1x128xf32> to vector<32x128xf32>
    %34 = arith.addf %31, %33 : vector<32x128xf32>
    %c0_18 = arith.constant 0 : index
    %c0_19 = arith.constant 0 : index
    %35 = vector.load %arg8[%c0_18, %c0_19] : memref<32x128xf32, #tpu.memory_space<vmem>>, vector<32x128xf32>
    tpu.vector_store %arg8[%c0_18, %c0_19], %34 {strides = array<i32>} : memref<32x128xf32, #tpu.memory_space<vmem>>, vector<32x128xf32>,
    return
  }
  func.func @transform_0(%arg0: i32) -> (i32, i32) {
    %c0_i32 = arith.constant 0 : i32
    %c0_i32_0 = arith.constant 0 : i32
    return %arg0, %c0_i32 : i32, i32
  }
  func.func @transform_1(%arg0: i32) -> (i32, i32) {
    %c0_i32 = arith.constant 0 : i32
    %c0_i32_0 = arith.constant 0 : i32
    %c0_i32_1 = arith.constant 0 : i32
    return %c0_i32, %c0_i32_0 : i32, i32
  }
  func.func @transform_2(%arg0: i32) -> (i32, i32) {
    %c0_i32 = arith.constant 0 : i32
    %c0_i32_0 = arith.constant 0 : i32
    %c0_i32_1 = arith.constant 0 : i32
    return %c0_i32, %c0_i32_0 : i32, i32
  }
  func.func @transform_3(%arg0: i32) -> (i32, i32) {
    %c0_i32 = arith.constant 0 : i32
    %c0_i32_0 = arith.constant 0 : i32
    %c0_i32_1 = arith.constant 0 : i32
    return %c0_i32, %c0_i32_0 : i32, i32
  }
  func.func @transform_4(%arg0: i32) -> (i32, i32) {
    %c0_i32 = arith.constant 0 : i32
    %c0_i32_0 = arith.constant 0 : i32
    %c0_i32_1 = arith.constant 0 : i32
    return %c0_i32, %c0_i32_0 : i32, i32
  }
  func.func @transform_5(%arg0: i32) -> (i32, i32) {
    %c0_i32 = arith.constant 0 : i32
    %c0_i32_0 = arith.constant 0 : i32
    %c0_i32_1 = arith.constant 0 : i32
    return %c0_i32, %c0_i32_0 : i32, i32
  }
  func.func @transform_6(%arg0: i32) -> (i32, i32) {
    %c0_i32 = arith.constant 0 : i32
    %c0_i32_0 = arith.constant 0 : i32
    %c0_i32_1 = arith.constant 0 : i32
    return %c0_i32, %c0_i32_0 : i32, i32
  }
  func.func @transform_7(%arg0: i32) -> (i32, i32) {
    %c0_i32 = arith.constant 0 : i32
    %c0_i32_0 = arith.constant 0 : i32
    return %arg0, %c0_i32 : i32, i32
  }
}

</mosaic_0001>

<llo_original>
// kernel: tpu_custom_call.1
$region0: #{tpu_custom_call.1}
  #allocation0 [shape = 'u32[]', space=smem, size = 0x4, offset = 0x4, fixed_abs, tag = 'smem constant byte address 0x4 - core index']
  #allocation1 [shape = 'u32[144,128]{1,0:T(1,128)}', space=vmem, size = 0x12000, scoped, tag = 'internal scratch']
  %s0 = inlined_call_operand.hbm [shape: bf16[128,128], index: 0, kind: input, shape index: {}]
  %s1 = inlined_call_operand.hbm [shape: bf16[128,384], index: 1, kind: input, shape index: {}]
  %s2 = inlined_call_operand.vmem [shape: f32[1,384], index: 2, kind: input, shape index: {}]
  %s3 = inlined_call_operand.hbm [shape: bf16[128,128], index: 3, kind: input, shape index: {}]
  %s4 = inlined_call_operand.vmem [shape: f32[1,128], index: 4, kind: input, shape index: {}]
  %s5 = inlined_call_operand.hbm [shape: bf16[128,128], index: 5, kind: input, shape index: {}]
  %s6 = inlined_call_operand.vmem [shape: f32[1,128], index: 6, kind: input, shape index: {}]
  %s7 = inlined_call_operand.hbm [shape: f32[128,128], index: 7, kind: output, shape index: {}]
  %s8 = sld [smem:[#allocation0]]
  $region77: #{tpu_custom_call.1} parent=0
    _
  %s10 = ssub.s32 1, %s8
  %s11 = scalar_select 0, %s10, %s8
  $region1: #{tpu_custom_call.1} parent=0
    #allocation2 [shape = 'u8[16384]{0}', space=vmem, size = 0x4000, scoped, tag = 'input window, operand 0']
    #allocation3 [shape = 's32[2]{0}', space=sflag, size = 0x8, scoped, tag = 'scoped memory for tpu_custom_call.1']
    #allocation4 [shape = 's32[2]{0}', space=sflag, size = 0x8, scoped, tag = 'scoped memory for tpu_custom_call.1']
    #allocation5 [shape = 'u8[98304]{0}', space=vmem, size = 0x18000, scoped, tag = 'input window, operand 1, single buffered']
    #allocation6 [shape = 's32[1]{0}', space=sflag, size = 0x4, scoped, tag = 'scoped memory for tpu_custom_call.1']
    #allocation7 [shape = 'u8[32768]{0}', space=vmem, size = 0x8000, scoped, tag = 'input window, operand 3, single buffered']
    #allocation8 [shape = 'u8[32768]{0}', space=vmem, size = 0x8000, scoped, tag = 'input window, operand 5, single buffered']
    #allocation9 [shape = 's32[1]{0}', space=sflag, size = 0x4, scoped, tag = 'scoped memory for tpu_custom_call.1']
    #allocation10 [shape = 'u8[32768]{0}', space=vmem, size = 0x8000, scoped, tag = 'output window, operand 0']
    %12 = vsyncpa [#allocation3], 0
    %s13 = scalar_lea.sflag [#allocation3], 1
    %14 = vsyncpa %s13, 0
    %15 = vsyncpa [#allocation6], 0
    %16 = vsyncpa [#allocation9], 0
    %17 = vsyncpa [#allocation4], 0
    %s18 = scalar_lea.sflag [#allocation4], 1
    %19 = vsyncpa %s18, 0
    loop: start=0, step=1, limit=6
    $region2: #{tpu_custom_call.1} parent=1 // loop_pre_header
      _
    $region3: #{tpu_custom_call.1} parent=1 // loop_header
      %s21 = sphi 0, %s25
      %p22 = scmp.ge.s32.totalorder %s21, 6
      %s31 = sphi 0, %s33
      %s34 = sphi 0, %s31
      %s35 = sphi 0, %s34
      %s51 = sphi 0, %s35
      %s55 = sphi 0, %s55
      %s57 = sphi 0, %s55
      %s58 = sphi 0, %s57
      %s72 = sphi 0, %s58
      %s76 = sphi 0, %s76
      %s78 = sphi 0, %s76
      %s79 = sphi 0, %s78
      %s93 = sphi 0, %s79
      %s97 = sphi 0, %s97
      %s99 = sphi 0, %s97
      %s100 = sphi 0, %s99
      %s114 = sphi 0, %s100
      %s118 = sphi 0, %s118
      %s120 = sphi 0, %s118
      %s121 = sphi 0, %s120
      %s135 = sphi 0, %s121
      %s139 = sphi 0, %s139
      %s141 = sphi 0, %s139
      %s142 = sphi 0, %s141
      %s156 = sphi 0, %s142
      %s160 = sphi 0, %s160
      %s162 = sphi 0, %s160
      %s163 = sphi 0, %s162
      %s177 = sphi 0, %s163
      %s183 = sphi 0, %s185
      %s186 = sphi 0, %s183
      %s187 = sphi 0, %s186
      %s203 = sphi 0, %s187
    $region4: #{tpu_custom_call.1} parent=1 // loop_header_branch
      %24 = sbr.rel (%p22) target = $region8
    $region5: #{tpu_custom_call.1} parent=1 // loop_body
      %s26 = ssub.s32 %s21, 1
      %s27 = ssub.s32 %s21, 2
      %s28 = sadd.s32 %s21, 1
      %s29 = ssub.s32 %s21, %s28
      %p30 = scmp.eq.s32.totalorder %s29, 0
      %s32 = sadd.s32 %s31, 1
      %s33 = scalar_select %p30, %s31, %s32
      %p36 = pneg %p30
      %p37 = scmp.eq.s32.totalorder %s21, 3
      %p38 = por %p36, %p37
      %p39 = scmp.ne.s32.totalorder %s31, %s34
      %p40 = scmp.eq.s32.totalorder %s21, 0
      %p41 = por %p39, %p40
      %p42 = scmp.ne.s32.totalorder %s31, %s34
      %p43 = scmp.eq.s32.totalorder %s26, 3
      %p44 = por %p42, %p43
      %p45 = scmp.ne.s32.totalorder %s34, %s35
      %p46 = scmp.eq.s32.totalorder %s26, 0
      %p47 = por %p45, %p46
      %p48 = scmp.ne.s32.totalorder %s34, %s35
      %p49 = scmp.eq.s32.totalorder %s27, 3
      %p50 = por %p48, %p49
      %p52 = scmp.ne.s32.totalorder %s35, %s51
      %p53 = scmp.eq.s32.totalorder %s27, 0
      %p54 = por %p52, %p53
      %s56 = sadd.s32 %s55, 1
      %p59 = scmp.eq.s32.totalorder %s21, 3
      %p60 = scmp.ne.s32.totalorder %s55, %s57
      %p61 = scmp.eq.s32.totalorder %s21, 0
      %p62 = por %p60, %p61
      %p63 = scmp.ne.s32.totalorder %s55, %s57
      %p64 = scmp.eq.s32.totalorder %s26, 3
      %p65 = por %p63, %p64
      %p66 = scmp.ne.s32.totalorder %s57, %s58
      %p67 = scmp.eq.s32.totalorder %s26, 0
      %p68 = por %p66, %p67
      %p69 = scmp.ne.s32.totalorder %s57, %s58
      %p70 = scmp.eq.s32.totalorder %s27, 3
      %p71 = por %p69, %p70
      %p73 = scmp.ne.s32.totalorder %s58, %s72
      %p74 = scmp.eq.s32.totalorder %s27, 0
      %p75 = por %p73, %p74
      %s77 = sadd.s32 %s76, 1
      %p80 = scmp.eq.s32.totalorder %s21, 3
      %p81 = scmp.ne.s32.totalorder %s76, %s78
      %p82 = scmp.eq.s32.totalorder %s21, 0
      %p83 = por %p81, %p82
      %p84 = scmp.ne.s32.totalorder %s76, %s78
      %p85 = scmp.eq.s32.totalorder %s26, 3
      %p86 = por %p84, %p85
      %p87 = scmp.ne.s32.totalorder %s78, %s79
      %p88 = scmp.eq.s32.totalorder %s26, 0
      %p89 = por %p87, %p88
      %p90 = scmp.ne.s32.totalorder %s78, %s79
      %p91 = scmp.eq.s32.totalorder %s27, 3
      %p92 = por %p90, %p91
      %p94 = scmp.ne.s32.totalorder %s79, %s93
      %p95 = scmp.eq.s32.totalorder %s27, 0
      %p96 = por %p94, %p95
      %s98 = sadd.s32 %s97, 1
      %p101 = scmp.eq.s32.totalorder %s21, 3
      %p102 = scmp.ne.s32.totalorder %s97, %s99
      %p103 = scmp.eq.s32.totalorder %s21, 0
      %p104 = por %p102, %p103
      %p105 = scmp.ne.s32.totalorder %s97, %s99
      %p106 = scmp.eq.s32.totalorder %s26, 3
      %p107 = por %p105, %p106
      %p108 = scmp.ne.s32.totalorder %s99, %s100
      %p109 = scmp.eq.s32.totalorder %s26, 0
      %p110 = por %p108, %p109
      %p111 = scmp.ne.s32.totalorder %s99, %s100
      %p112 = scmp.eq.s32.totalorder %s27, 3
      %p113 = por %p111, %p112
      %p115 = scmp.ne.s32.totalorder %s100, %s114
      %p116 = scmp.eq.s32.totalorder %s27, 0
      %p117 = por %p115, %p116
      %s119 = sadd.s32 %s118, 1
      %p122 = scmp.eq.s32.totalorder %s21, 3
      %p123 = scmp.ne.s32.totalorder %s118, %s120
      %p124 = scmp.eq.s32.totalorder %s21, 0
      %p125 = por %p123, %p124
      %p126 = scmp.ne.s32.totalorder %s118, %s120
      %p127 = scmp.eq.s32.totalorder %s26, 3
      %p128 = por %p126, %p127
      %p129 = scmp.ne.s32.totalorder %s120, %s121
      %p130 = scmp.eq.s32.totalorder %s26, 0
      %p131 = por %p129, %p130
      %p132 = scmp.ne.s32.totalorder %s120, %s121
      %p133 = scmp.eq.s32.totalorder %s27, 3
      %p134 = por %p132, %p133
      %p136 = scmp.ne.s32.totalorder %s121, %s135
      %p137 = scmp.eq.s32.totalorder %s27, 0
      %p138 = por %p136, %p137
      %s140 = sadd.s32 %s139, 1
      %p143 = scmp.eq.s32.totalorder %s21, 3
      %p144 = scmp.ne.s32.totalorder %s139, %s141
      %p145 = scmp.eq.s32.totalorder %s21, 0
      %p146 = por %p144, %p145
      %p147 = scmp.ne.s32.totalorder %s139, %s141
      %p148 = scmp.eq.s32.totalorder %s26, 3
      %p149 = por %p147, %p148
      %p150 = scmp.ne.s32.totalorder %s141, %s142
      %p151 = scmp.eq.s32.totalorder %s26, 0
      %p152 = por %p150, %p151
      %p153 = scmp.ne.s32.totalorder %s141, %s142
      %p154 = scmp.eq.s32.totalorder %s27, 3
      %p155 = por %p153, %p154
      %p157 = scmp.ne.s32.totalorder %s142, %s156
      %p158 = scmp.eq.s32.totalorder %s27, 0
      %p159 = por %p157, %p158
      %s161 = sadd.s32 %s160, 1
      %p164 = scmp.eq.s32.totalorder %s21, 3
      %p165 = scmp.ne.s32.totalorder %s160, %s162
      %p166 = scmp.eq.s32.totalorder %s21, 0
      %p167 = por %p165, %p166
      %p168 = scmp.ne.s32.totalorder %s160, %s162
      %p169 = scmp.eq.s32.totalorder %s26, 3
      %p170 = por %p168, %p169
      %p171 = scmp.ne.s32.totalorder %s162, %s163
      %p172 = scmp.eq.s32.totalorder %s26, 0
      %p173 = por %p171, %p172
      %p174 = scmp.ne.s32.totalorder %s162, %s163
      %p175 = scmp.eq.s32.totalorder %s27, 3
      %p176 = por %p174, %p175
      %p178 = scmp.ne.s32.totalorder %s163, %s177
      %p179 = scmp.eq.s32.totalorder %s27, 0
      %p180 = por %p178, %p179
      %s181 = ssub.s32 %s21, %s28
      %p182 = scmp.eq.s32.totalorder %s181, 0
      %s184 = sadd.s32 %s183, 1
      %s185 = scalar_select %p182, %s183, %s184
      %p188 = pneg %p182
      %p189 = scmp.eq.s32.totalorder %s21, 3
      %p190 = por %p188, %p189
      %p191 = scmp.ne.s32.totalorder %s183, %s186
      %p192 = scmp.eq.s32.totalorder %s21, 0
      %p193 = por %p191, %p192
      %p194 = scmp.ne.s32.totalorder %s183, %s186
      %p195 = scmp.eq.s32.totalorder %s26, 3
      %p196 = por %p194, %p195
      %p197 = scmp.ne.s32.totalorder %s186, %s187
      %p198 = scmp.eq.s32.totalorder %s26, 0
      %p199 = por %p197, %p198
      %p200 = scmp.ne.s32.totalorder %s186, %s187
      %p201 = scmp.eq.s32.totalorder %s27, 3
      %p202 = por %p200, %p201
      %p204 = scmp.ne.s32.totalorder %s187, %s203
      %p205 = scmp.eq.s32.totalorder %s27, 0
      %p206 = por %p204, %p205
      %p207 = scmp.le.s32.totalorder 1, %s21
      %p208 = scmp.lt.s32.totalorder %s21, 5
      %p209 = pnand %p207, %p208
      %p210 = pneg %p209
      // Predicated region
      $region9: #{tpu_custom_call.1} parent=5 // pred_check
        _
      $region10: #{tpu_custom_call.1} parent=5 // pred_check_branch
        %212 = sbr.rel (%p209) target = $region12
      $region11: #{tpu_custom_call.1} parent=5 // pred_region
        %s213 = ssub.s32 %s21, 1
        // Predicated region
        $region13: #{tpu_custom_call.1} parent=11 // pred_check
          %p214 = pneg %p68
        $region14: #{tpu_custom_call.1} parent=11 // pred_check_branch
          %216 = sbr.rel (%p214) target = $region16
        $region15: #{tpu_custom_call.1} parent=11 // pred_region
          %s218 = ssub.s32 3072, 3072
          %219 = vsyncadd [#allocation6], %s218
          %s220 = sshll.u32 [#allocation5], 4
          %s221 = int_to_ptr.vmem [resolvable:$true] %s220
          %226 = dma.hbm_to_vmem [thread:$0]  %s1, 3072, %s221, [#allocation6], 192, 192, 12
        $region16: #{tpu_custom_call.1} parent=11 // pred_fallthru
          _
        // Predicated region
        $region17: #{tpu_custom_call.1} parent=11 // pred_check
          %p227 = pneg %p89
        $region18: #{tpu_custom_call.1} parent=11 // pred_check_branch
          %229 = sbr.rel (%p227) target = $region20
        $region19: #{tpu_custom_call.1} parent=11 // pred_region
          _
        $region20: #{tpu_custom_call.1} parent=11 // pred_fallthru
          _
        // Predicated region
        $region21: #{tpu_custom_call.1} parent=11 // pred_check
          %p230 = pneg %p110
        $region22: #{tpu_custom_call.1} parent=11 // pred_check_branch
          %232 = sbr.rel (%p230) target = $region24
        $region23: #{tpu_custom_call.1} parent=11 // pred_region
          %s234 = ssub.s32 1024, 1024
          %235 = vsyncadd [#allocation6], %s234
          %s236 = sshll.u32 [#allocation7], 4
          %s237 = int_to_ptr.vmem [resolvable:$true] %s236
          %242 = dma.hbm_to_vmem [thread:$0]  %s3, 1024, %s237, [#allocation6], 64, 64, 4
        $region24: #{tpu_custom_call.1} parent=11 // pred_fallthru
          _
        // Predicated region
        $region25: #{tpu_custom_call.1} parent=11 // pred_check
          %p243 = pneg %p131
        $region26: #{tpu_custom_call.1} parent=11 // pred_check_branch
          %245 = sbr.rel (%p243) target = $region28
        $region27: #{tpu_custom_call.1} parent=11 // pred_region
          _
        $region28: #{tpu_custom_call.1} parent=11 // pred_fallthru
          _
        // Predicated region
        $region29: #{tpu_custom_call.1} parent=11 // pred_check
          %p246 = pneg %p152
        $region30: #{tpu_custom_call.1} parent=11 // pred_check_branch
          %248 = sbr.rel (%p246) target = $region32
        $region31: #{tpu_custom_call.1} parent=11 // pred_region
          %s250 = ssub.s32 1024, 1024
          %251 = vsyncadd [#allocation9], %s250
          %s252 = sshll.u32 [#allocation8], 4
          %s253 = int_to_ptr.vmem [resolvable:$true] %s252
          %258 = dma.hbm_to_vmem [thread:$0]  %s5, 1024, %s253, [#allocation9], 64, 64, 4
        $region32: #{tpu_custom_call.1} parent=11 // pred_fallthru
          _
        // Predicated region
        $region33: #{tpu_custom_call.1} parent=11 // pred_check
          %p259 = pneg %p173
        $region34: #{tpu_custom_call.1} parent=11 // pred_check_branch
          %261 = sbr.rel (%p259) target = $region36
        $region35: #{tpu_custom_call.1} parent=11 // pred_region
          _
        $region36: #{tpu_custom_call.1} parent=11 // pred_fallthru
          _
      $region12: #{tpu_custom_call.1} parent=5 // pred_fallthru
        _
      %p262 = scmp.lt.s32.totalorder %s21, 4
      // Predicated region
      $region37: #{tpu_custom_call.1} parent=5 // pred_check
        %p263 = pneg %p262
      $region38: #{tpu_custom_call.1} parent=5 // pred_check_branch
        %265 = sbr.rel (%p263) target = $region40
      $region39: #{tpu_custom_call.1} parent=5 // pred_region
        // Predicated region
        $region41: #{tpu_custom_call.1} parent=39 // pred_check
          %p266 = pneg %p41
        $region42: #{tpu_custom_call.1} parent=39 // pred_check_branch
          %268 = sbr.rel (%p266) target = $region44
        $region43: #{tpu_custom_call.1} parent=39 // pred_region
          %s269 = sand.u32 %s31, 1
          %s270 = scalar_lea.sflag [#allocation3], %s269
          %s271 = sand.u32 %s31, 1
          %s272 = smul.addr %s271, 16
          %s273 = scalar_lea.vmem [#allocation2], %s272
          %s274 = smul.u32 4, %s21
          %s276 = ssub.s32 256, 256
          %277 = vsyncadd %s270, %s276
          %s278 = smul.addr %s274, 64
          %s279 = scalar_lea.hbm %s0, %s278
          %s280 = sshll.u32 %s273, 4
          %s281 = int_to_ptr.vmem [resolvable:$true] %s280
          %286 = dma.hbm_to_vmem [thread:$0]  %s279, 256, %s281, %s270, 64, 64, 4
        $region44: #{tpu_custom_call.1} parent=39 // pred_fallthru
          _
      $region40: #{tpu_custom_call.1} parent=5 // pred_fallthru
        _
      %p287 = scmp.le.s32.totalorder 1, %s21
      %p288 = scmp.lt.s32.totalorder %s21, 5
      %p289 = pnand %p287, %p288
      %p290 = pneg %p289
      // Predicated region
      $region45: #{tpu_custom_call.1} parent=5 // pred_check
        _
      $region46: #{tpu_custom_call.1} parent=5 // pred_check_branch
        %292 = sbr.rel (%p289) target = $region48
      $region47: #{tpu_custom_call.1} parent=5 // pred_region
        %s293 = ssub.s32 %s21, 1
        %s294 = sand.u32 %s34, 1
        %s295 = scalar_lea.sflag [#allocation3], %s294
        %s296 = sand.u32 %s34, 1
        %s297 = smul.addr %s296, 16
        %s298 = scalar_lea.vmem [#allocation2], %s297
        // Predicated region
        $region49: #{tpu_custom_call.1} parent=47 // pred_check
          %p299 = pneg %p47
        $region50: #{tpu_custom_call.1} parent=47 // pred_check_branch
          %301 = sbr.rel (%p299) target = $region52
        $region51: #{tpu_custom_call.1} parent=47 // pred_region
          %302 = dma.done %s295, 256
        $region52: #{tpu_custom_call.1} parent=47 // pred_fallthru
          _
        // Predicated region
        $region53: #{tpu_custom_call.1} parent=47 // pred_check
          %p303 = pneg %p68
        $region54: #{tpu_custom_call.1} parent=47 // pred_check_branch
          %305 = sbr.rel (%p303) target = $region56
        $region55: #{tpu_custom_call.1} parent=47 // pred_region
          %306 = dma.done [#allocation6], 3072
        $region56: #{tpu_custom_call.1} parent=47 // pred_fallthru
          _
        // Predicated region
        $region57: #{tpu_custom_call.1} parent=47 // pred_check
          %p307 = pneg %p110
        $region58: #{tpu_custom_call.1} parent=47 // pred_check_branch
          %309 = sbr.rel (%p307) target = $region60
        $region59: #{tpu_custom_call.1} parent=47 // pred_region
          %310 = dma.done [#allocation6], 1024
        $region60: #{tpu_custom_call.1} parent=47 // pred_fallthru
          _
        // Predicated region
        $region61: #{tpu_custom_call.1} parent=47 // pred_check
          %p311 = pneg %p152
        $region62: #{tpu_custom_call.1} parent=47 // pred_check_branch
          %313 = sbr.rel (%p311) target = $region64
        $region63: #{tpu_custom_call.1} parent=47 // pred_region
          %314 = dma.done [#allocation9], 1024
        $region64: #{tpu_custom_call.1} parent=47 // pred_fallthru
          _
        %s315 = sand.u32 %s34, 1
        %s316 = scalar_lea.sflag [#allocation3], %s315
        %s317 = sand.u32 %s34, 1
        %s318 = smul.addr %s317, 16
        %s319 = scalar_lea.vmem [#allocation2], %s318
        %p320 = pneg %p47
        %p321 = pneg %p44
        %p322 = pneg %p68
        %p323 = pneg %p65
        %p324 = pneg %p89
        %p325 = pneg %p86
        %p326 = pneg %p110
        %p327 = pneg %p107
        %p328 = pneg %p131
        %p329 = pneg %p128
        %p330 = pneg %p152
        %p331 = pneg %p149
        %p332 = pneg %p173
        %p333 = pneg %p170
        %p334 = pneg %p199
        %p335 = pneg %p196
        %s336 = sand.u32 %s186, 1
        %s337 = scalar_lea.sflag [#allocation4], %s336
        %s338 = sand.u32 %s186, 1
        %s339 = smul.addr %s338, 32
        %s340 = scalar_lea.vmem [#allocation10], %s339
        %s341 = smul.u32 4, %s26
        %s342 = smul.u32 4, %s26
        %v344 = vld [vmem:[%s298] sm:$0xf]
        %v345 = vld [vmem:[%s298 + $0x4] sm:$0xf]
        %v346 = vld [vmem:[%s298 + $0x8] sm:$0xf]
        %v347 = vld [vmem:[%s298 + $0xc] sm:$0xf]
        %v348 = vld [vmem:[#allocation5] sm:$0xff]
        %v349 = vld [vmem:[#allocation5 + $0x8] sm:$0xf]
        %v350 = vld [vmem:[#allocation5 + $0xc] sm:$0xff]
        %v351 = vld [vmem:[#allocation5 + $0x14] sm:$0xf]
        %v352 = vld [vmem:[#allocation5 + $0x18] sm:$0xff]
        %v353 = vld [vmem:[#allocation5 + $0x20] sm:$0xf]
        %v354 = vld [vmem:[#allocation5 + $0x24] sm:$0xff]
        %v355 = vld [vmem:[#allocation5 + $0x2c] sm:$0xf]
        %v356 = vld [vmem:[#allocation5 + $0x30] sm:$0xff]
        %v357 = vld [vmem:[#allocation5 + $0x38] sm:$0xf]
        %v358 = vld [vmem:[#allocation5 + $0x3c] sm:$0xff]
        %v359 = vld [vmem:[#allocation5 + $0x44] sm:$0xf]
        %v360 = vld [vmem:[#allocation5 + $0x48] sm:$0xff]
        %v361 = vld [vmem:[#allocation5 + $0x50] sm:$0xf]
        %v362 = vld [vmem:[#allocation5 + $0x54] sm:$0xff]
        %v363 = vld [vmem:[#allocation5 + $0x5c] sm:$0xf]
        %v364 = vld [vmem:[#allocation5 + $0x60] sm:$0xff]
        %v365 = vld [vmem:[#allocation5 + $0x68] sm:$0xf]
        %v366 = vld [vmem:[#allocation5 + $0x6c] sm:$0xff]
        %v367 = vld [vmem:[#allocation5 + $0x74] sm:$0xf]
        %v368 = vld [vmem:[#allocation5 + $0x78] sm:$0xff]
        %v369 = vld [vmem:[#allocation5 + $0x80] sm:$0xf]
        %v370 = vld [vmem:[#allocation5 + $0x84] sm:$0xff]
        %v371 = vld [vmem:[#allocation5 + $0x8c] sm:$0xf]
        %v372 = vld [vmem:[#allocation5 + $0x90] sm:$0xff]
        %v373 = vld [vmem:[#allocation5 + $0x98] sm:$0xf]
        %v374 = vld [vmem:[#allocation5 + $0x9c] sm:$0xff]
        %v375 = vld [vmem:[#allocation5 + $0xa4] sm:$0xf]
        %v376 = vld [vmem:[#allocation5 + $0xa8] sm:$0xff]
        %v377 = vld [vmem:[#allocation5 + $0xb0] sm:$0xf]
        %v378 = vld [vmem:[#allocation5 + $0xb4] sm:$0xff]
        %v379 = vld [vmem:[#allocation5 + $0xbc] sm:$0xf]
        %v380 = vld [vmem:[%s2] sm:$0x7]
        %v382 = vlaneseq
        %v383 = vshrl.u32 %v382, 7
        %v384 = vsub.s32 0, %v383
        %v385 = vrot.slane %v380, %v384
        %v386 = vlaneseq
        %v387 = vshrl.u32 %v386, 7
        %v388 = vsub.s32 1, %v387
        %v389 = vrot.slane %v380, %v388
        %v390 = vlaneseq
        %v391 = vshrl.u32 %v390, 7
        %v392 = vsub.s32 2, %v391
        %v393 = vrot.slane %v380, %v392
        %v401 = vunpack.c.l.b16 %v344
        %v402 = vunpack.c.l.b16 %v345
        %v403 = vunpack.c.l.b16 %v346
        %v404 = vunpack.c.l.b16 %v347
        %v405 = vpack.c.b16 %v402, %v401
        %v406 = vpack.c.b16 %v404, %v403
        %v441 = vunpack.c.l.b16 %v348
        %v442 = vunpack.c.h.b16 %v348
        %v443 = vunpack.c.l.b16 %v349
        %v444 = vunpack.c.l.b16 %v350
        %v445 = vunpack.c.h.b16 %v350
        %v446 = vunpack.c.l.b16 %v351
        %v447 = vunpack.c.l.b16 %v352
        %v448 = vunpack.c.h.b16 %v352
        %v449 = vunpack.c.l.b16 %v353
        %v450 = vunpack.c.l.b16 %v354
        %v451 = vunpack.c.h.b16 %v354
        %v452 = vunpack.c.l.b16 %v355
        %v453 = vunpack.c.l.b16 %v356
        %v454 = vunpack.c.h.b16 %v356
        %v455 = vunpack.c.l.b16 %v357
        %v456 = vunpack.c.l.b16 %v358
        %v457 = vunpack.c.h.b16 %v358
        %v458 = vunpack.c.l.b16 %v359
        %v459 = vunpack.c.l.b16 %v360
        %v460 = vunpack.c.h.b16 %v360
        %v461 = vunpack.c.l.b16 %v361
        %v462 = vunpack.c.l.b16 %v362
        %v463 = vunpack.c.h.b16 %v362
        %v464 = vunpack.c.l.b16 %v363
        %v465 = vunpack.c.l.b16 %v364
        %v466 = vunpack.c.h.b16 %v364
        %v467 = vunpack.c.l.b16 %v365
        %v468 = vunpack.c.l.b16 %v366
        %v469 = vunpack.c.h.b16 %v366
        %v470 = vunpack.c.l.b16 %v367
        %v471 = vunpack.c.l.b16 %v368
        %v472 = vunpack.c.h.b16 %v368
        %v473 = vunpack.c.l.b16 %v369
        %v474 = vunpack.c.l.b16 %v370
        %v475 = vunpack.c.h.b16 %v370
        %v476 = vunpack.c.l.b16 %v371
        %v477 = vunpack.c.l.b16 %v372
        %v478 = vunpack.c.h.b16 %v372
        %v479 = vunpack.c.l.b16 %v373
        %v480 = vunpack.c.l.b16 %v374
        %v481 = vunpack.c.h.b16 %v374
        %v482 = vunpack.c.l.b16 %v375
        %v483 = vunpack.c.l.b16 %v376
        %v484 = vunpack.c.h.b16 %v376
        %v485 = vunpack.c.l.b16 %v377
        %v486 = vunpack.c.l.b16 %v378
        %v487 = vunpack.c.h.b16 %v378
        %v488 = vunpack.c.l.b16 %v379
        %v489 = vpack.c.b16 %v444, %v441
        %v490 = vpack.c.b16 %v445, %v442
        %v491 = vpack.c.b16 %v446, %v443
        %v492 = vpack.c.b16 %v450, %v447
        %v493 = vpack.c.b16 %v451, %v448
        %v494 = vpack.c.b16 %v452, %v449
        %v495 = vpack.c.b16 %v456, %v453
        %v496 = vpack.c.b16 %v457, %v454
        %v497 = vpack.c.b16 %v458, %v455
        %v498 = vpack.c.b16 %v462, %v459
        %v499 = vpack.c.b16 %v463, %v460
        %v500 = vpack.c.b16 %v464, %v461
        %v501 = vpack.c.b16 %v468, %v465
        %v502 = vpack.c.b16 %v469, %v466
        %v503 = vpack.c.b16 %v470, %v467
        %v504 = vpack.c.b16 %v474, %v471
        %v505 = vpack.c.b16 %v475, %v472
        %v506 = vpack.c.b16 %v476, %v473
        %v507 = vpack.c.b16 %v480, %v477
        %v508 = vpack.c.b16 %v481, %v478
        %v509 = vpack.c.b16 %v482, %v479
        %v510 = vpack.c.b16 %v486, %v483
        %v511 = vpack.c.b16 %v487, %v484
        %v512 = vpack.c.b16 %v488, %v485
        %537 = vmatprep.subr.bf16.mxu0 %v490
        %538 = vmatpush1.bf16.msra.mxu0 %v489
        %539 = vmatprep.subr.bf16.mxu0 %v493
        %540 = vmatpush1.bf16.msra.mxu0 %v492
        %541 = vmatprep.subr.bf16.mxu0 %v496
        %542 = vmatpush1.bf16.msra.mxu0 %v495
        %543 = vmatprep.subr.bf16.mxu0 %v499
        %544 = vmatpush1.bf16.msra.mxu0 %v498
        %545 = vmatprep.subr.bf16.mxu0 %v502
        %546 = vmatpush1.bf16.msra.mxu0 %v501
        %547 = vmatprep.subr.bf16.mxu0 %v505
        %548 = vmatpush1.bf16.msra.mxu0 %v504
        %549 = vmatprep.subr.bf16.mxu0 %v508
        %550 = vmatpush1.bf16.msra.mxu0 %v507
        %551 = vmatprep.subr.bf16.mxu0 %v511
        %552 = vmatpush1.bf16.msra.mxu0 %v510
        %553 = vmatprep.subr.bf16.mxu0 0
        %554 = vmatpush1.bf16.msra.mxu0 0
        %555 = vmatprep.subr.bf16.mxu0 0
        %556 = vmatpush1.bf16.msra.mxu0 0
        %557 = vmatprep.subr.bf16.mxu0 0
        %558 = vmatpush1.bf16.msra.mxu0 0
        %559 = vmatprep.subr.bf16.mxu0 0
        %560 = vmatpush1.bf16.msra.mxu0 0
        %561 = vmatprep.subr.bf16.mxu0 0
        %562 = vmatpush1.bf16.msra.mxu0 0
        %563 = vmatprep.subr.bf16.mxu0 0
        %564 = vmatpush1.bf16.msra.mxu0 0
        %565 = vmatprep.subr.bf16.mxu0 0
        %566 = vmatpush1.bf16.msra.mxu0 0
        %567 = vmatprep.subr.bf16.mxu0 0
        %568 = vmatpush1.bf16.msra.mxu0 0
        %569 = vmatprep.mubr.bf16.mxu0 0
        %570 = vmatmul.mubr.bf16.gmra.mrb[0].mxu0 %v405
        %v571 = vpop.f32.mrb[0].mxu0
        %v572 = vadd.f32 %v385, %v571
        %v573 = vpop.f32.mrb[0].mxu0
        %v574 = vadd.f32 %v389, %v573
        %v575 = vpop.f32.mrb[0].mxu0
        %v576 = vadd.f32 %v385, %v575
        %v577 = vpop.f32.mrb[0].mxu0
        %v578 = vadd.f32 %v389, %v577
        %579 = vmatprep.mubr.bf16.mxu0 0
        %580 = vmatmul.mubr.bf16.gmra.mrb[0].mxu0 %v406
        %v581 = vpop.f32.mrb[0].mxu0
        %v582 = vadd.f32 %v385, %v581
        %v583 = vpop.f32.mrb[0].mxu0
        %v584 = vadd.f32 %v389, %v583
        %v585 = vpop.f32.mrb[0].mxu0
        %v586 = vadd.f32 %v385, %v585
        %v587 = vpop.f32.mrb[0].mxu0
        %v588 = vadd.f32 %v389, %v587
        %589 = vdwg.mxu0
        %590 = vmatprep.subr.bf16.mxu0 0
        %591 = vmatpush1.bf16.msra.mxu0 %v491
        %592 = vmatprep.subr.bf16.mxu0 0
        %593 = vmatpush1.bf16.msra.mxu0 %v494
        %594 = vmatprep.subr.bf16.mxu0 0
        %595 = vmatpush1.bf16.msra.mxu0 %v497
        %596 = vmatprep.subr.bf16.mxu0 0
        %597 = vmatpush1.bf16.msra.mxu0 %v500
        %598 = vmatprep.subr.bf16.mxu0 0
        %599 = vmatpush1.bf16.msra.mxu0 %v503
        %600 = vmatprep.subr.bf16.mxu0 0
        %601 = vmatpush1.bf16.msra.mxu0 %v506
        %602 = vmatprep.subr.bf16.mxu0 0
        %603 = vmatpush1.bf16.msra.mxu0 %v509
        %604 = vmatprep.subr.bf16.mxu0 0
        %605 = vmatpush1.bf16.msra.mxu0 %v512
        %606 = vmatprep.subr.bf16.mxu0 0
        %607 = vmatpush1.bf16.msra.mxu0 0
        %608 = vmatprep.subr.bf16.mxu0 0
        %609 = vmatpush1.bf16.msra.mxu0 0
        %610 = vmatprep.subr.bf16.mxu0 0
        %611 = vmatpush1.bf16.msra.mxu0 0
        %612 = vmatprep.subr.bf16.mxu0 0
        %613 = vmatpush1.bf16.msra.mxu0 0
        %614 = vmatprep.subr.bf16.mxu0 0
        %615 = vmatpush1.bf16.msra.mxu0 0
        %616 = vmatprep.subr.bf16.mxu0 0
        %617 = vmatpush1.bf16.msra.mxu0 0
        %618 = vmatprep.subr.bf16.mxu0 0
        %619 = vmatpush1.bf16.msra.mxu0 0
        %620 = vmatprep.subr.bf16.mxu0 0
        %621 = vmatpush1.bf16.msra.mxu0 0
        %622 = vmatprep.mubr.bf16.mxu0 0
        %623 = vmatmul.mubr.bf16.gmra.mrb[0].mxu0 %v405
        %v624 = vpop.f32.mrb[0].mxu0
        %v625 = vadd.f32 %v393, %v624
        %v626 = vpop.f32.mrb[0].mxu0
        %v627 = vpop.f32.mrb[0].mxu0
        %v628 = vadd.f32 %v393, %v627
        %v629 = vpop.f32.mrb[0].mxu0
        %630 = vmatprep.mubr.bf16.mxu0 0
        %631 = vmatmul.mubr.bf16.gmra.mrb[0].mxu0 %v406
        %v632 = vpop.f32.mrb[0].mxu0
        %v633 = vadd.f32 %v393, %v632
        %v634 = vpop.f32.mrb[0].mxu0
        %v635 = vpop.f32.mrb[0].mxu0
        %v636 = vadd.f32 %v393, %v635
        %v637 = vpop.f32.mrb[0].mxu0
        %638 = vdwg.mxu0
        %v639 = vmul.f32 %v572, %v574
        %v640 = vmul.f32 %v576, %v578
        %v641 = vmul.f32 %v582, %v584
        %v642 = vmul.f32 %v586, %v588
        %v643 = vpack.c.bf16 %v640, %v639
        %v644 = vpack.c.bf16 %v642, %v641
        %v645 = vld [vmem:[#allocation7] sm:$0xf]
        %v646 = vld [vmem:[#allocation7 + $0x4] sm:$0xf]
        %v647 = vld [vmem:[#allocation7 + $0x8] sm:$0xf]
        %v648 = vld [vmem:[#allocation7 + $0xc] sm:$0xf]
        %v649 = vld [vmem:[#allocation7 + $0x10] sm:$0xf]
        %v650 = vld [vmem:[#allocation7 + $0x14] sm:$0xf]
        %v651 = vld [vmem:[#allocation7 + $0x18] sm:$0xf]
        %v652 = vld [vmem:[#allocation7 + $0x1c] sm:$0xf]
        %v653 = vld [vmem:[#allocation7 + $0x20] sm:$0xf]
        %v654 = vld [vmem:[#allocation7 + $0x24] sm:$0xf]
        %v655 = vld [vmem:[#allocation7 + $0x28] sm:$0xf]
        %v656 = vld [vmem:[#allocation7 + $0x2c] sm:$0xf]
        %v657 = vld [vmem:[#allocation7 + $0x30] sm:$0xf]
        %v658 = vld [vmem:[#allocation7 + $0x34] sm:$0xf]
        %v659 = vld [vmem:[#allocation7 + $0x38] sm:$0xf]
        %v660 = vld [vmem:[#allocation7 + $0x3c] sm:$0xf]
        %v661 = vld [vmem:[%s4] sm:$0x1]
        %v663 = vlaneseq
        %v664 = vshrl.u32 %v663, 7
        %v665 = vsub.s32 0, %v664
        %v666 = vrot.slane %v661, %v665
        %v684 = vunpack.c.l.b16 %v645
        %v685 = vunpack.c.l.b16 %v646
        %v686 = vunpack.c.l.b16 %v647
        %v687 = vunpack.c.l.b16 %v648
        %v688 = vunpack.c.l.b16 %v649
        %v689 = vunpack.c.l.b16 %v650
        %v690 = vunpack.c.l.b16 %v651
        %v691 = vunpack.c.l.b16 %v652
        %v692 = vunpack.c.l.b16 %v653
        %v693 = vunpack.c.l.b16 %v654
        %v694 = vunpack.c.l.b16 %v655
        %v695 = vunpack.c.l.b16 %v656
        %v696 = vunpack.c.l.b16 %v657
        %v697 = vunpack.c.l.b16 %v658
        %v698 = vunpack.c.l.b16 %v659
        %v699 = vunpack.c.l.b16 %v660
        %v700 = vpack.c.b16 %v685, %v684
        %v701 = vpack.c.b16 %v687, %v686
        %v702 = vpack.c.b16 %v689, %v688
        %v703 = vpack.c.b16 %v691, %v690
        %v704 = vpack.c.b16 %v693, %v692
        %v705 = vpack.c.b16 %v695, %v694
        %v706 = vpack.c.b16 %v697, %v696
        %v707 = vpack.c.b16 %v699, %v698
        %716 = vmatprep.subr.bf16.mxu0 0
        %717 = vmatpush1.bf16.msra.mxu0 %v700
        %718 = vmatprep.subr.bf16.mxu0 0
        %719 = vmatpush1.bf16.msra.mxu0 %v701
        %720 = vmatprep.subr.bf16.mxu0 0
        %721 = vmatpush1.bf16.msra.mxu0 %v702
        %722 = vmatprep.subr.bf16.mxu0 0
        %723 = vmatpush1.bf16.msra.mxu0 %v703
        %724 = vmatprep.subr.bf16.mxu0 0
        %725 = vmatpush1.bf16.msra.mxu0 %v704
        %726 = vmatprep.subr.bf16.mxu0 0
        %727 = vmatpush1.bf16.msra.mxu0 %v705
        %728 = vmatprep.subr.bf16.mxu0 0
        %729 = vmatpush1.bf16.msra.mxu0 %v706
        %730 = vmatprep.subr.bf16.mxu0 0
        %731 = vmatpush1.bf16.msra.mxu0 %v707
        %732 = vmatprep.subr.bf16.mxu0 0
        %733 = vmatpush1.bf16.msra.mxu0 0
        %734 = vmatprep.subr.bf16.mxu0 0
        %735 = vmatpush1.bf16.msra.mxu0 0
        %736 = vmatprep.subr.bf16.mxu0 0
        %737 = vmatpush1.bf16.msra.mxu0 0
        %738 = vmatprep.subr.bf16.mxu0 0
        %739 = vmatpush1.bf16.msra.mxu0 0
        %740 = vmatprep.subr.bf16.mxu0 0
        %741 = vmatpush1.bf16.msra.mxu0 0
        %742 = vmatprep.subr.bf16.mxu0 0
        %743 = vmatpush1.bf16.msra.mxu0 0
        %744 = vmatprep.subr.bf16.mxu0 0
        %745 = vmatpush1.bf16.msra.mxu0 0
        %746 = vmatprep.subr.bf16.mxu0 0
        %747 = vmatpush1.bf16.msra.mxu0 0
        %748 = vmatprep.mubr.bf16.mxu0 0
        %749 = vmatmul.mubr.bf16.gmra.mrb[0].mxu0 %v643
        %v750 = vpop.f32.mrb[0].mxu0
        %v751 = vadd.f32 %v666, %v750
        %v752 = vpop.f32.mrb[0].mxu0
        %v753 = vpop.f32.mrb[0].mxu0
        %v754 = vadd.f32 %v666, %v753
        %v755 = vpop.f32.mrb[0].mxu0
        %756 = vmatprep.mubr.bf16.mxu0 0
        %757 = vmatmul.mubr.bf16.gmra.mrb[0].mxu0 %v644
        %v758 = vpop.f32.mrb[0].mxu0
        %v759 = vadd.f32 %v666, %v758
        %v760 = vpop.f32.mrb[0].mxu0
        %v761 = vpop.f32.mrb[0].mxu0
        %v762 = vadd.f32 %v666, %v761
        %v763 = vpop.f32.mrb[0].mxu0
        %764 = vdwg.mxu0
        %765 = vmax.xlane.f32.xlu0 %v751
        %v766 = vpop.xlane.xlu0 %765
        %767 = vmax.xlane.f32.xlu0 %v754
        %v768 = vpop.xlane.xlu0 %767
        %769 = vmax.xlane.f32.xlu0 %v759
        %v770 = vpop.xlane.xlu0 %769
        %771 = vmax.xlane.f32.xlu0 %v762
        %v772 = vpop.xlane.xlu0 %771
        %v773 = vsub.f32 %v751, %v766
        %v774 = vsub.f32 %v754, %v768
        %v775 = vsub.f32 %v759, %v770
        %v776 = vsub.f32 %v762, %v772
        %v777 = vmul.f32 %v773, 1.442695
        %v778 = vpow.pop %v777
        %v779 = vmul.f32 %v774, 1.442695
        %v780 = vpow.pop %v779
        %v781 = vmul.f32 %v775, 1.442695
        %v782 = vpow.pop %v781
        %v783 = vmul.f32 %v776, 1.442695
        %v784 = vpow.pop %v783
        %785 = vadd.xlane.f32.xlu0 %v778
        %v786 = vpop.xlane.xlu0 %785
        %787 = vadd.xlane.f32.xlu0 %v780
        %v788 = vpop.xlane.xlu0 %787
        %789 = vadd.xlane.f32.xlu0 %v782
        %v790 = vpop.xlane.xlu0 %789
        %791 = vadd.xlane.f32.xlu0 %v784
        %v792 = vpop.xlane.xlu0 %791
        %v793 = vmul.f32 %v786, 0.125
        %v794 = vmul.f32 %v788, 0.125
        %v795 = vmul.f32 %v790, 0.125
        %v796 = vmul.f32 %v792, 0.125
        %v797 = vrcp.pop %v793
        %v798 = vrcp.pop %v794
        %v799 = vrcp.pop %v795
        %v800 = vrcp.pop %v796
        %v801 = vmul.f32 %v778, %v797
        %v802 = vmul.f32 %v780, %v798
        %v803 = vmul.f32 %v782, %v799
        %v804 = vmul.f32 %v784, %v800
        %v805 = vmul.f32 %v801, %v625
        %v806 = vmul.f32 %v802, %v628
        %v807 = vmul.f32 %v803, %v633
        %v808 = vmul.f32 %v804, %v636
        %v809 = vpack.c.bf16 %v806, %v805
        %v810 = vpack.c.bf16 %v808, %v807
        %v811 = vld [vmem:[#allocation8] sm:$0xf]
        %v812 = vld [vmem:[#allocation8 + $0x4] sm:$0xf]
        %v813 = vld [vmem:[#allocation8 + $0x8] sm:$0xf]
        %v814 = vld [vmem:[#allocation8 + $0xc] sm:$0xf]
        %v815 = vld [vmem:[#allocation8 + $0x10] sm:$0xf]
        %v816 = vld [vmem:[#allocation8 + $0x14] sm:$0xf]
        %v817 = vld [vmem:[#allocation8 + $0x18] sm:$0xf]
        %v818 = vld [vmem:[#allocation8 + $0x1c] sm:$0xf]
        %v819 = vld [vmem:[#allocation8 + $0x20] sm:$0xf]
        %v820 = vld [vmem:[#allocation8 + $0x24] sm:$0xf]
        %v821 = vld [vmem:[#allocation8 + $0x28] sm:$0xf]
        %v822 = vld [vmem:[#allocation8 + $0x2c] sm:$0xf]
        %v823 = vld [vmem:[#allocation8 + $0x30] sm:$0xf]
        %v824 = vld [vmem:[#allocation8 + $0x34] sm:$0xf]
        %v825 = vld [vmem:[#allocation8 + $0x38] sm:$0xf]
        %v826 = vld [vmem:[#allocation8 + $0x3c] sm:$0xf]
        %v827 = vld [vmem:[%s6] sm:$0x1]
        %v829 = vlaneseq
        %v830 = vshrl.u32 %v829, 7
        %v831 = vsub.s32 0, %v830
        %v832 = vrot.slane %v827, %v831
        %v850 = vunpack.c.l.b16 %v811
        %v851 = vunpack.c.l.b16 %v812
        %v852 = vunpack.c.l.b16 %v813
        %v853 = vunpack.c.l.b16 %v814
        %v854 = vunpack.c.l.b16 %v815
        %v855 = vunpack.c.l.b16 %v816
        %v856 = vunpack.c.l.b16 %v817
        %v857 = vunpack.c.l.b16 %v818
        %v858 = vunpack.c.l.b16 %v819
        %v859 = vunpack.c.l.b16 %v820
        %v860 = vunpack.c.l.b16 %v821
        %v861 = vunpack.c.l.b16 %v822
        %v862 = vunpack.c.l.b16 %v823
        %v863 = vunpack.c.l.b16 %v824
        %v864 = vunpack.c.l.b16 %v825
        %v865 = vunpack.c.l.b16 %v826
        %v866 = vpack.c.b16 %v851, %v850
        %v867 = vpack.c.b16 %v853, %v852
        %v868 = vpack.c.b16 %v855, %v854
        %v869 = vpack.c.b16 %v857, %v856
        %v870 = vpack.c.b16 %v859, %v858
        %v871 = vpack.c.b16 %v861, %v860
        %v872 = vpack.c.b16 %v863, %v862
        %v873 = vpack.c.b16 %v865, %v864
        %882 = vmatprep.subr.bf16.mxu0 0
        %883 = vmatpush1.bf16.msra.mxu0 %v866
        %884 = vmatprep.subr.bf16.mxu0 0
        %885 = vmatpush1.bf16.msra.mxu0 %v867
        %886 = vmatprep.subr.bf16.mxu0 0
        %887 = vmatpush1.bf16.msra.mxu0 %v868
        %888 = vmatprep.subr.bf16.mxu0 0
        %889 = vmatpush1.bf16.msra.mxu0 %v869
        %890 = vmatprep.subr.bf16.mxu0 0
        %891 = vmatpush1.bf16.msra.mxu0 %v870
        %892 = vmatprep.subr.bf16.mxu0 0
        %893 = vmatpush1.bf16.msra.mxu0 %v871
        %894 = vmatprep.subr.bf16.mxu0 0
        %895 = vmatpush1.bf16.msra.mxu0 %v872
        %896 = vmatprep.subr.bf16.mxu0 0
        %897 = vmatpush1.bf16.msra.mxu0 %v873
        %898 = vmatprep.subr.bf16.mxu0 0
        %899 = vmatpush1.bf16.msra.mxu0 0
        %900 = vmatprep.subr.bf16.mxu0 0
        %901 = vmatpush1.bf16.msra.mxu0 0
        %902 = vmatprep.subr.bf16.mxu0 0
        %903 = vmatpush1.bf16.msra.mxu0 0
        %904 = vmatprep.subr.bf16.mxu0 0
        %905 = vmatpush1.bf16.msra.mxu0 0
        %906 = vmatprep.subr.bf16.mxu0 0
        %907 = vmatpush1.bf16.msra.mxu0 0
        %908 = vmatprep.subr.bf16.mxu0 0
        %909 = vmatpush1.bf16.msra.mxu0 0
        %910 = vmatprep.subr.bf16.mxu0 0
        %911 = vmatpush1.bf16.msra.mxu0 0
        %912 = vmatprep.subr.bf16.mxu0 0
        %913 = vmatpush1.bf16.msra.mxu0 0
        %914 = vmatprep.mubr.bf16.mxu0 0
        %915 = vmatmul.mubr.bf16.gmra.mrb[0].mxu0 %v809
        %v916 = vpop.f32.mrb[0].mxu0
        %v917 = vadd.f32 %v832, %v916
        %v918 = vpop.f32.mrb[0].mxu0
        %v919 = vpop.f32.mrb[0].mxu0
        %v920 = vadd.f32 %v832, %v919
        %v921 = vpop.f32.mrb[0].mxu0
        %922 = vmatprep.mubr.bf16.mxu0 0
        %923 = vmatmul.mubr.bf16.gmra.mrb[0].mxu0 %v810
        %v924 = vpop.f32.mrb[0].mxu0
        %v925 = vadd.f32 %v832, %v924
        %v926 = vpop.f32.mrb[0].mxu0
        %v927 = vpop.f32.mrb[0].mxu0
        %v928 = vadd.f32 %v832, %v927
        %v929 = vpop.f32.mrb[0].mxu0
        %930 = vdwg.mxu0
        %931 = vst [vmem:[%s340] sm:$0xff] %v917
        %932 = vst [vmem:[%s340 + $0x8] sm:$0xff] %v920
        %933 = vst [vmem:[%s340 + $0x10] sm:$0xff] %v925
        %934 = vst [vmem:[%s340 + $0x18] sm:$0xff] %v928
        %s935 = sand.u32 %s186, 1
        %s936 = scalar_lea.sflag [#allocation4], %s935
        %s937 = sand.u32 %s186, 1
        %s938 = smul.addr %s937, 32
        %s939 = scalar_lea.vmem [#allocation10], %s938
        // Predicated region
        $region65: #{tpu_custom_call.1} parent=47 // pred_check
          %p940 = pneg %p196
        $region66: #{tpu_custom_call.1} parent=47 // pred_check_branch
          %942 = sbr.rel (%p940) target = $region68
        $region67: #{tpu_custom_call.1} parent=47 // pred_region
          %s943 = smul.u32 4, %s26
          %s945 = ssub.s32 512, 512
          %946 = vsyncadd %s936, %s945
          %s947 = smul.addr %s943, 128
          %s948 = scalar_lea.hbm %s7, %s947
          %s949 = sshll.u32 %s939, 4
          %s950 = int_to_ptr.vmem [resolvable:$true] %s949
          %955 = dma.vmem_to_hbm [thread:$0]  %s950, 512, %s948, %s936, 128, 128, 8
        $region68: #{tpu_custom_call.1} parent=47 // pred_fallthru
          _
      $region48: #{tpu_custom_call.1} parent=5 // pred_fallthru
        _
      %p956 = scmp.le.s32.totalorder 2, %s21
      // Predicated region
      $region69: #{tpu_custom_call.1} parent=5 // pred_check
        %p957 = pneg %p956
      $region70: #{tpu_custom_call.1} parent=5 // pred_check_branch
        %959 = sbr.rel (%p957) target = $region72
      $region71: #{tpu_custom_call.1} parent=5 // pred_region
        %s960 = ssub.s32 %s21, 2
        // Predicated region
        $region73: #{tpu_custom_call.1} parent=71 // pred_check
          %p961 = pneg %p202
        $region74: #{tpu_custom_call.1} parent=71 // pred_check_branch
          %963 = sbr.rel (%p961) target = $region76
        $region75: #{tpu_custom_call.1} parent=71 // pred_region
          %s964 = sand.u32 %s187, 1
          %s965 = scalar_lea.sflag [#allocation4], %s964
          %s966 = sand.u32 %s187, 1
          %s967 = smul.addr %s966, 32
          %s968 = scalar_lea.vmem [#allocation10], %s967
          %969 = dma.done %s965, 512
        $region76: #{tpu_custom_call.1} parent=71 // pred_fallthru
          _
      $region72: #{tpu_custom_call.1} parent=5 // pred_fallthru
        _
    $region6: #{tpu_custom_call.1} parent=1 // loop_footer
      %s25 = sadd.s32 1, %s21
    $region7: #{tpu_custom_call.1} parent=1 // loop_footer_branch
      %20 = sbr.rel target = $region3
    $region8: #{tpu_custom_call.1} parent=1 // loop_exit
      _
    %970 = vsyncpa [#allocation3], 1
    %s971 = scalar_lea.sflag [#allocation3], 1
    %972 = vsyncpa %s971, 1
    %973 = vsyncpa [#allocation6], 1
    %974 = vsyncpa [#allocation9], 1
    %975 = vsyncpa [#allocation4], 1
    %s976 = scalar_lea.sflag [#allocation4], 1
    %977 = vsyncpa %s976, 1

</llo_original>
